<compile_context>
chip_gen: v7x
topology: tpu7x:2x2x1
jax: 0.10.0
libtpu: 0.0.40
codegen_flags: <defaults>
</compile_context>

<pallas_src>
from functools import partial

import jax
import jax.numpy as jnp
from jax import lax
from jax.experimental import pallas as pl
from jax.experimental.pallas import tpu as pltpu

_GAMMA = 2
_ALPHA = 0.25
_LANES = 128


def _focal_loss_kernel(x0_ref, x1_ref, t_ref, out_ref, acc_nll, acc_t, *, n_valid):
    sub, lanes = x0_ref.shape
    i = pl.program_id(0)

    @pl.when(i == 0)
    def _init():
        acc_nll[...] = jnp.zeros_like(acc_nll)
        acc_t[...] = jnp.zeros_like(acc_t)

    x0 = x0_ref[...].astype(jnp.float32)          # (sub, 128) class-0 logits
    x1 = x1_ref[...].astype(jnp.float32)          # (sub, 128) class-1 logits
    t = t_ref[...]                                # (sub, 128) int32 targets

    # Mask padded rows of the final tile (global sample index >= n_valid).
    row = (i * sub + lax.broadcasted_iota(jnp.int32, (sub, lanes), 0)) * lanes \
        + lax.broadcasted_iota(jnp.int32, (sub, lanes), 1)
    valid = row < n_valid

    # 2-class log-softmax NLL: lse - x[target]; all VPU elementwise + 1 EUP
    # exp and 1 EUP log per element.
    m = jnp.maximum(x0, x1)
    lse = m + jnp.log(1.0 + jnp.exp(-jnp.abs(x0 - x1)))
    picked = jnp.where(t == 1, x1, x0)
    nll = jnp.where(valid, lse - picked, 0.0)
    tf = jnp.where(valid, t.astype(jnp.float32), 0.0)

    # Running sums across grid steps (XLU reduce hidden under the DMA).
    acc_nll[...] += jnp.sum(nll, axis=1, keepdims=True).sum(axis=0, keepdims=True)
    acc_t[...] += jnp.sum(tf, axis=1, keepdims=True).sum(axis=0, keepdims=True)

    @pl.when(i == pl.num_programs(0) - 1)
    def _finalize():
        inv_n = 1.0 / float(n_valid)
        logp = acc_nll[...] * inv_n               # scalar CE (mean), as (1,1)
        mean_t = acc_t[...] * inv_n               # mean of targets,   as (1,1)
        p = jnp.exp(-logp)
        # mean over samples of the focal expression is linear in target:
        out_ref[...] = (_ALPHA * (1.0 - p) ** _GAMMA * logp * mean_t
                        + (1.0 - _ALPHA) * p ** _GAMMA * logp * (1.0 - mean_t))


def focal_loss(logits, target, *, block_sublanes=1024):
    """logits: (N, 2) float (any float dtype); target: (N,) integer {0,1}."""
    n, c = logits.shape
    if c != 2:
        raise NotImplementedError("kernel is specialized for binary C == 2")
    assert block_sublanes % 8 == 0

    # Tile sizing: `sub` sublanes x 128 lanes of samples per grid step.
    total_sub = pl.cdiv(n, _LANES)
    sub = min(block_sublanes, max(8, pl.cdiv(total_sub, 8) * 8))
    block = sub * _LANES
    n_pad = pl.cdiv(n, block) * block
    pad = n_pad - n
    grid = (n_pad // block,)

    # Lane-dense layout plumbing (one-time XLA pad/reshape outside the kernel):
    # class columns separated; batch index mapped row-major to (sublane, lane).
    # Logits stay in their native dtype; the f32 cast happens inside the kernel.
    x0 = jnp.pad(logits[:, 0], (0, pad)).reshape(n_pad // _LANES, _LANES)
    x1 = jnp.pad(logits[:, 1], (0, pad)).reshape(n_pad // _LANES, _LANES)
    tt = jnp.pad(target.astype(jnp.int32), (0, pad)).reshape(n_pad // _LANES, _LANES)

    blk = pl.BlockSpec((sub, _LANES), lambda i: (i, 0))
    out = pl.pallas_call(
        partial(_focal_loss_kernel, n_valid=n),
        out_shape=jax.ShapeDtypeStruct((1, 1), jnp.float32),
        grid=grid,
        in_specs=[blk, blk, blk],
        out_specs=pl.BlockSpec((1, 1), lambda i: (0, 0)),
        scratch_shapes=[pltpu.VMEM((1, 1), jnp.float32),
                        pltpu.VMEM((1, 1), jnp.float32)],
        compiler_params=pltpu.CompilerParams(
            dimension_semantics=("arbitrary",)),
    )(x0, x1, tt)
    return out[0, 0]


def _reference(logits, target):
    # pure-JAX reference mirroring the PyTorch module
    x = logits.astype(jnp.float32)
    t = target.astype(jnp.int32)
    logz = jax.nn.logsumexp(x, axis=-1)
    picked = jnp.take_along_axis(x, t[:, None], axis=-1)[:, 0]
    logp = jnp.mean(logz - picked)                     # CrossEntropyLoss (mean)
    p = jnp.exp(-logp)
    tf = t.astype(jnp.float32)
    loss = (_ALPHA * (1.0 - p) ** _GAMMA * logp * tf
            + (1.0 - _ALPHA) * p ** _GAMMA * logp * (1.0 - tf))
    return jnp.mean(loss)


if __name__ == "__main__":
    key = jax.random.PRNGKey(0)
    k1, k2, k3, k4 = jax.random.split(key, 4)

    # Small case matching the module's usage (binary classification).
    N, C = 8, 2
    logits = jax.random.normal(k1, (N, C), dtype=jnp.float32)
    target = jax.random.randint(k2, (N,), 0, 2, dtype=jnp.int32)

    loss = focal_loss(logits, target)
    jax.block_until_ready(loss)
    ref = _reference(logits, target)
    assert jnp.allclose(loss, ref, atol=1e-5, rtol=1e-5), (loss, ref)

    # Multi-tile case: bf16 inputs (native dtype, no pre-cast), grid > 1,
    # partially-masked final tile.
    N2 = 3000
    logits2 = jax.random.normal(k3, (N2, C), dtype=jnp.bfloat16)
    target2 = jax.random.randint(k4, (N2,), 0, 2, dtype=jnp.int32)

    loss2 = focal_loss(logits2, target2, block_sublanes=8)
    jax.block_until_ready(loss2)
    ref2 = _reference(logits2, target2)
    assert jnp.allclose(loss2, ref2, atol=1e-4, rtol=1e-4), (loss2, ref2)

    print("KERNEL_OK")
</pallas_src>

<mosaic_0001>
module attributes {stable_mosaic.version = 11 : i64} {
  func.func @_focal_loss_kernel(%arg0: i32, %arg1: memref<8x128xf32, #tpu.memory_space<vmem>>, %arg2: memref<8x128xf32, #tpu.memory_space<vmem>>, %arg3: memref<8x128xi32, #tpu.memory_space<vmem>>, %arg4: memref<1x1xf32, #tpu.memory_space<vmem>>, %arg5: memref<1x1xf32, #tpu.memory_space<vmem>>, %arg6: memref<1x1xf32, #tpu.memory_space<vmem>>) attributes {dimension_semantics = [#tpu.dimension_semantics<arbitrary>], iteration_bounds = array<i64: 1>, scalar_prefetch = 0 : i64, scratch_operands = 2 : i64, tpu.core_type = #tpu.core_type<tc>, window_params = [{transform_indices = @transform_0, window_bounds = array<i64: 8, 128>}, {transform_indices = @transform_1, window_bounds = array<i64: 8, 128>}, {transform_indices = @transform_2, window_bounds = array<i64: 8, 128>}, {pipeline_mode = #tpu.pipeline_mode<synchronous>, transform_indices = @transform_3, window_bounds = array<i64: 1, 1>}]} {
    %c0_i32 = arith.constant 0 : i32
    %0 = arith.cmpi eq, %arg0, %c0_i32 : i32
    %1 = arith.extui %0 : i1 to i32
    %c0_i32_0 = arith.constant 0 : i32
    %2 = arith.cmpi ne, %1, %c0_i32_0 : i32
    scf.if %2 {
      %cst_24 = arith.constant 0.000000e+00 : f32
      %52 = vector.broadcast %cst_24 : f32 to vector<1x1xf32>
      %c0_25 = arith.constant 0 : index
      %c0_26 = arith.constant 0 : index
      %53 = vector.load %arg5[%c0_25, %c0_26] : memref<1x1xf32, #tpu.memory_space<vmem>>, vector<1x1xf32>
      tpu.vector_store %arg5[%c0_25, %c0_26], %52 {strides = array<i32>} : memref<1x1xf32, #tpu.memory_space<vmem>>, vector<1x1xf32>,
      %cst_27 = arith.constant 0.000000e+00 : f32
      %54 = vector.broadcast %cst_27 : f32 to vector<1x1xf32>
      %c0_28 = arith.constant 0 : index
      %c0_29 = arith.constant 0 : index
      %55 = vector.load %arg6[%c0_28, %c0_29] : memref<1x1xf32, #tpu.memory_space<vmem>>, vector<1x1xf32>
      tpu.vector_store %arg6[%c0_28, %c0_29], %54 {strides = array<i32>} : memref<1x1xf32, #tpu.memory_space<vmem>>, vector<1x1xf32>,
    } else {
    }
    %c0 = arith.constant 0 : index
    %c0_1 = arith.constant 0 : index
    %3 = vector.load %arg1[%c0, %c0_1] : memref<8x128xf32, #tpu.memory_space<vmem>>, vector<8x128xf32>
    %c0_2 = arith.constant 0 : index
    %c0_3 = arith.constant 0 : index
    %4 = vector.load %arg2[%c0_2, %c0_3] : memref<8x128xf32, #tpu.memory_space<vmem>>, vector<8x128xf32>
    %c0_4 = arith.constant 0 : index
    %c0_5 = arith.constant 0 : index
    %5 = vector.load %arg3[%c0_4, %c0_5] : memref<8x128xi32, #tpu.memory_space<vmem>>, vector<8x128xi32>
    %c8_i32 = arith.constant 8 : i32
    %6 = arith.muli %arg0, %c8_i32 : i32
    %7 = tpu.iota {dimensions = array<i32: 0>} : vector<8x128xi32>
    %8 = vector.broadcast %6 : i32 to vector<8x128xi32>
    %9 = arith.addi %8, %7 : vector<8x128xi32>
    %c128_i32 = arith.constant 128 : i32
    %10 = vector.broadcast %c128_i32 : i32 to vector<8x128xi32>
    %11 = arith.muli %9, %10 : vector<8x128xi32>
    %12 = tpu.iota {dimensions = array<i32: 1>} : vector<8x128xi32>
    %13 = arith.addi %11, %12 : vector<8x128xi32>
    %c8_i32_6 = arith.constant 8 : i32
    %14 = vector.broadcast %c8_i32_6 : i32 to vector<8x128xi32>
    %15 = arith.cmpi slt, %13, %14 : vector<8x128xi32>
    %16 = arith.maximumf %3, %4 : vector<8x128xf32>
    %17 = arith.subf %3, %4 : vector<8x128xf32>
    %18 = math.absf %17 : vector<8x128xf32>
    %cst = arith.constant 0.000000e+00 : f32
    %19 = vector.broadcast %cst : f32 to vector<8x128xf32>
    %20 = arith.subf %19, %18 : vector<8x128xf32>
    %21 = math.exp %20 : vector<8x128xf32>
    %cst_7 = arith.constant 1.000000e+00 : f32
    %22 = vector.broadcast %cst_7 : f32 to vector<8x128xf32>
    %23 = arith.addf %22, %21 : vector<8x128xf32>
    %24 = math.log %23 : vector<8x128xf32>
    %25 = arith.addf %16, %24 : vector<8x128xf32>
    %c1_i32 = arith.constant 1 : i32
    %26 = vector.broadcast %c1_i32 : i32 to vector<8x128xi32>
    %27 = arith.cmpi eq, %5, %26 : vector<8x128xi32>
    %28 = arith.select %27, %4, %3 : vector<8x128xi1>, vector<8x128xf32>
    %29 = arith.subf %25, %28 : vector<8x128xf32>
    %cst_8 = arith.constant 0.000000e+00 : f32
    %30 = vector.broadcast %cst_8 : f32 to vector<8x128xf32>
    %31 = arith.select %15, %29, %30 : vector<8x128xi1>, vector<8x128xf32>
    %32 = arith.sitofp %5 : vector<8x128xi32> to vector<8x128xf32>
    %cst_9 = arith.constant 0.000000e+00 : f32
    %33 = vector.broadcast %cst_9 : f32 to vector<8x128xf32>
    %34 = arith.select %15, %32, %33 : vector<8x128xi1>, vector<8x128xf32>
    %c0_10 = arith.constant 0 : index
    %c0_11 = arith.constant 0 : index
    %35 = vector.load %arg5[%c0_10, %c0_11] : memref<1x1xf32, #tpu.memory_space<vmem>>, vector<1x1xf32>
    %cst_12 = arith.constant dense<0.000000e+00> : vector<8xf32>
    %36 = vector.multi_reduction <add>, %31, %cst_12 [1] : vector<8x128xf32> to vector<8xf32>
    %37 = vector.shape_cast %36 : vector<8xf32> to vector<8x1xf32>
    %cst_13 = arith.constant dense<0.000000e+00> : vector<1xf32>
    %38 = vector.multi_reduction <add>, %37, %cst_13 [0] : vector<8x1xf32> to vector<1xf32>
    %39 = vector.shape_cast %38 : vector<1xf32> to vector<1x1xf32>
    %40 = arith.addf %35, %39 : vector<1x1xf32>
    %c0_14 = arith.constant 0 : index
    %c0_15 = arith.constant 0 : index
    %41 = vector.load %arg5[%c0_14, %c0_15] : memref<1x1xf32, #tpu.memory_space<vmem>>, vector<1x1xf32>
    tpu.vector_store %arg5[%c0_14, %c0_15], %40 {strides = array<i32>} : memref<1x1xf32, #tpu.memory_space<vmem>>, vector<1x1xf32>,
    %c0_16 = arith.constant 0 : index
    %c0_17 = arith.constant 0 : index
    %42 = vector.load %arg6[%c0_16, %c0_17] : memref<1x1xf32, #tpu.memory_space<vmem>>, vector<1x1xf32>
    %cst_18 = arith.constant dense<0.000000e+00> : vector<8xf32>
    %43 = vector.multi_reduction <add>, %34, %cst_18 [1] : vector<8x128xf32> to vector<8xf32>
    %44 = vector.shape_cast %43 : vector<8xf32> to vector<8x1xf32>
    %cst_19 = arith.constant dense<0.000000e+00> : vector<1xf32>
    %45 = vector.multi_reduction <add>, %44, %cst_19 [0] : vector<8x1xf32> to vector<1xf32>
    %46 = vector.shape_cast %45 : vector<1xf32> to vector<1x1xf32>
    %47 = arith.addf %42, %46 : vector<1x1xf32>
    %c0_20 = arith.constant 0 : index
    %c0_21 = arith.constant 0 : index
    %48 = vector.load %arg6[%c0_20, %c0_21] : memref<1x1xf32, #tpu.memory_space<vmem>>, vector<1x1xf32>
    tpu.vector_store %arg6[%c0_20, %c0_21], %47 {strides = array<i32>} : memref<1x1xf32, #tpu.memory_space<vmem>>, vector<1x1xf32>,
    %c0_i32_22 = arith.constant 0 : i32
    %49 = arith.cmpi eq, %arg0, %c0_i32_22 : i32
    %50 = arith.extui %49 : i1 to i32
    %c0_i32_23 = arith.constant 0 : i32
    %51 = arith.cmpi ne, %50, %c0_i32_23 : i32
    scf.if %51 {
      %c0_24 = arith.constant 0 : index
      %c0_25 = arith.constant 0 : index
      %52 = vector.load %arg5[%c0_24, %c0_25] : memref<1x1xf32, #tpu.memory_space<vmem>>, vector<1x1xf32>
      %cst_26 = arith.constant 1.250000e-01 : f32
      %53 = vector.broadcast %cst_26 : f32 to vector<1x1xf32>
      %54 = arith.mulf %52, %53 : vector<1x1xf32>
      %c0_27 = arith.constant 0 : index
      %c0_28 = arith.constant 0 : index
      %55 = vector.load %arg6[%c0_27, %c0_28] : memref<1x1xf32, #tpu.memory_space<vmem>>, vector<1x1xf32>
      %cst_29 = arith.constant 1.250000e-01 : f32
      %56 = vector.broadcast %cst_29 : f32 to vector<1x1xf32>
      %57 = arith.mulf %55, %56 : vector<1x1xf32>
      %cst_30 = arith.constant 0.000000e+00 : f32
      %58 = vector.broadcast %cst_30 : f32 to vector<1x1xf32>
      %59 = arith.subf %58, %54 : vector<1x1xf32>
      %60 = math.exp %59 : vector<1x1xf32>
      %cst_31 = arith.constant 1.000000e+00 : f32
      %61 = vector.broadcast %cst_31 : f32 to vector<1x1xf32>
      %62 = arith.subf %61, %60 : vector<1x1xf32>
      %63 = arith.mulf %62, %62 : vector<1x1xf32>
      %cst_32 = arith.constant 2.500000e-01 : f32
      %64 = vector.broadcast %cst_32 : f32 to vector<1x1xf32>
      %65 = arith.mulf %64, %63 : vector<1x1xf32>
      %66 = arith.mulf %65, %54 : vector<1x1xf32>
      %67 = arith.mulf %66, %57 : vector<1x1xf32>
      %68 = arith.mulf %60, %60 : vector<1x1xf32>
      %cst_33 = arith.constant 7.500000e-01 : f32
      %69 = vector.broadcast %cst_33 : f32 to vector<1x1xf32>
      %70 = arith.mulf %69, %68 : vector<1x1xf32>
      %71 = arith.mulf %70, %54 : vector<1x1xf32>
      %cst_34 = arith.constant 1.000000e+00 : f32
      %72 = vector.broadcast %cst_34 : f32 to vector<1x1xf32>
      %73 = arith.subf %72, %57 : vector<1x1xf32>
      %74 = arith.mulf %71, %73 : vector<1x1xf32>
      %75 = arith.addf %67, %74 : vector<1x1xf32>
      %c0_35 = arith.constant 0 : index
      %c0_36 = arith.constant 0 : index
      %76 = vector.load %arg4[%c0_35, %c0_36] : memref<1x1xf32, #tpu.memory_space<vmem>>, vector<1x1xf32>
      tpu.vector_store %arg4[%c0_35, %c0_36], %75 {strides = array<i32>} : memref<1x1xf32, #tpu.memory_space<vmem>>, vector<1x1xf32>,
    } else {
    }
    return
  }
  func.func @transform_0(%arg0: i32) -> (i32, i32) {
    %c0_i32 = arith.constant 0 : i32
    %c0_i32_0 = arith.constant 0 : i32
    return %arg0, %c0_i32 : i32, i32
  }
  func.func @transform_1(%arg0: i32) -> (i32, i32) {
    %c0_i32 = arith.constant 0 : i32
    %c0_i32_0 = arith.constant 0 : i32
    return %arg0, %c0_i32 : i32, i32
  }
  func.func @transform_2(%arg0: i32) -> (i32, i32) {
    %c0_i32 = arith.constant 0 : i32
    %c0_i32_0 = arith.constant 0 : i32
    return %arg0, %c0_i32 : i32, i32
  }
  func.func @transform_3(%arg0: i32) -> (i32, i32) {
    %c0_i32 = arith.constant 0 : i32
    %c0_i32_0 = arith.constant 0 : i32
    %c0_i32_1 = arith.constant 0 : i32
    return %c0_i32, %c0_i32_0 : i32, i32
  }
}

</mosaic_0001>

<llo_original>
// kernel: tpu_custom_call.1
$region0: #{tpu_custom_call.1}
  #allocation0 [shape = 'u32[]', space=smem, size = 0x4, offset = 0x4, fixed_abs, tag = 'smem constant byte address 0x4 - core index']
  #allocation1 [shape = 'u32[144,128]{1,0:T(1,128)}', space=vmem, size = 0x12000, scoped, tag = 'internal scratch']
  #allocation2 [shape = 'f32[1,1]{1,0:T(1,128)}', space=vmem, size = 0x200, scoped, tag = 'scratch operand']
  #allocation3 [shape = 'f32[1,1]{1,0:T(1,128)}', space=vmem, size = 0x200, scoped, tag = 'scratch operand']
  %s0 = inlined_call_operand.hbm [shape: f32[8,128], index: 0, kind: input, shape index: {}]
  %s1 = inlined_call_operand.hbm [shape: f32[8,128], index: 1, kind: input, shape index: {}]
  %s2 = inlined_call_operand.hbm [shape: s32[8,128], index: 2, kind: input, shape index: {}]
  %s3 = inlined_call_operand.hbm [shape: f32[1,1], index: 3, kind: output, shape index: {}]
  %s4 = sld [smem:[#allocation0]]
  $region42: #{tpu_custom_call.1} parent=0
    _
  %s6 = ssub.s32 1, %s4
  %s7 = scalar_select 0, %s6, %s4
  $region1: #{tpu_custom_call.1} parent=0
    #allocation4 [shape = 'u8[4096]{0}', space=vmem, size = 0x1000, scoped, tag = 'input window, operand 0, single buffered']
    #allocation5 [shape = 's32[1]{0}', space=sflag, size = 0x4, scoped, tag = 'scoped memory for tpu_custom_call.1']
    #allocation6 [shape = 's32[1]{0}', space=sflag, size = 0x4, scoped, tag = 'scoped memory for tpu_custom_call.1']
    #allocation7 [shape = 'u8[4096]{0}', space=vmem, size = 0x1000, scoped, tag = 'input window, operand 1, single buffered']
    #allocation8 [shape = 's32[1]{0}', space=sflag, size = 0x4, scoped, tag = 'scoped memory for tpu_custom_call.1']
    #allocation9 [shape = 'u8[4096]{0}', space=vmem, size = 0x1000, scoped, tag = 'input window, operand 2, single buffered']
    #allocation10 [shape = 'u8[512]{0}', space=vmem, size = 0x400, scoped, tag = 'output window, operand 0, single buffered']
    %8 = vsyncpa [#allocation5], 0
    %9 = vsyncpa [#allocation8], 0
    %10 = vsyncpa [#allocation6], 0
    // Predicated region
    $region2: #{tpu_custom_call.1} parent=1 // pred_check
      _
    $region3: #{tpu_custom_call.1} parent=1 // pred_check_branch
      %12 = sbr.rel (0) target = $region5
    $region4: #{tpu_custom_call.1} parent=1 // pred_region
      %s14 = ssub.s32 128, 128
      %15 = vsyncadd [#allocation5], %s14
      %s17 = sshll.u32 [#allocation4], 4
      %s18 = int_to_ptr.vmem [resolvable:$true] %s17
      %20 = dma.hbm_to_vmem [thread:$0]  %s0, 128, %s18, [#allocation5]
    $region5: #{tpu_custom_call.1} parent=1 // pred_fallthru
      _
    // Predicated region
    $region6: #{tpu_custom_call.1} parent=1 // pred_check
      _
    $region7: #{tpu_custom_call.1} parent=1 // pred_check_branch
      %22 = sbr.rel (0) target = $region9
    $region8: #{tpu_custom_call.1} parent=1 // pred_region
      %s24 = ssub.s32 128, 128
      %25 = vsyncadd [#allocation8], %s24
      %s27 = sshll.u32 [#allocation7], 4
      %s28 = int_to_ptr.vmem [resolvable:$true] %s27
      %30 = dma.hbm_to_vmem [thread:$0]  %s1, 128, %s28, [#allocation8]
    $region9: #{tpu_custom_call.1} parent=1 // pred_fallthru
      _
    // Predicated region
    $region10: #{tpu_custom_call.1} parent=1 // pred_check
      _
    $region11: #{tpu_custom_call.1} parent=1 // pred_check_branch
      %32 = sbr.rel (0) target = $region13
    $region12: #{tpu_custom_call.1} parent=1 // pred_region
      %s34 = ssub.s32 128, 128
      %35 = vsyncadd [#allocation8], %s34
      %s37 = sshll.u32 [#allocation9], 4
      %s38 = int_to_ptr.vmem [resolvable:$true] %s37
      %40 = dma.hbm_to_vmem [thread:$0]  %s2, 128, %s38, [#allocation8]
    $region13: #{tpu_custom_call.1} parent=1 // pred_fallthru
      _
    // Predicated region
    $region14: #{tpu_custom_call.1} parent=1 // pred_check
      _
    $region15: #{tpu_custom_call.1} parent=1 // pred_check_branch
      %42 = sbr.rel (0) target = $region17
    $region16: #{tpu_custom_call.1} parent=1 // pred_region
      %43 = dma.done [#allocation5], 128
    $region17: #{tpu_custom_call.1} parent=1 // pred_fallthru
      _
    // Predicated region
    $region18: #{tpu_custom_call.1} parent=1 // pred_check
      _
    $region19: #{tpu_custom_call.1} parent=1 // pred_check_branch
      %45 = sbr.rel (0) target = $region21
    $region20: #{tpu_custom_call.1} parent=1 // pred_region
      %46 = dma.done [#allocation8], 128
    $region21: #{tpu_custom_call.1} parent=1 // pred_fallthru
      _
    // Predicated region
    $region22: #{tpu_custom_call.1} parent=1 // pred_check
      _
    $region23: #{tpu_custom_call.1} parent=1 // pred_check_branch
      %48 = sbr.rel (0) target = $region25
    $region24: #{tpu_custom_call.1} parent=1 // pred_region
      %49 = dma.done [#allocation8], 128
    $region25: #{tpu_custom_call.1} parent=1 // pred_fallthru
      _
    %p50 = scmp.eq.s32.totalorder 0, 0
    // Predicated region
    $region26: #{tpu_custom_call.1} parent=1 // pred_check
      %p51 = pneg %p50
    $region27: #{tpu_custom_call.1} parent=1 // pred_check_branch
      %53 = sbr.rel (%p51) target = $region29
    $region28: #{tpu_custom_call.1} parent=1 // pred_region
      %vm54 = vcmask 0
      %55 = vst.msk [vmem:[#allocation2] sm:$0x1] %vm54, 0.0
      %56 = vst.msk [vmem:[#allocation3] sm:$0x1] %vm54, 0.0
    $region29: #{tpu_custom_call.1} parent=1 // pred_fallthru
      _
    %v57 = vld [vmem:[#allocation4] sm:$0xff]
    %v58 = vld [vmem:[#allocation7] sm:$0xff]
    %v59 = vld [vmem:[#allocation9] sm:$0xff]
    %s60 = smul.u32 0, 8
    %v61 = vlaneseq
    %v62 = vshrl.u32 %v61, 7
    %v63 = vstv %s60
    %v64 = vadd.s32 %v63, %v62
    %v65 = vmul.u32 %v64, 128
    %v66 = vlaneseq
    %v67 = vand.u32 %v66, 127
    %v68 = vadd.s32 %v65, %v67
    %vm69 = vcmp.lt.s32.totalorder %v68, 8
    %v70 = vmax.f32 %v57, %v58
    %v71 = vsub.f32 %v57, %v58
    %v72 = vand.u32 2147483647, %v71
    %v73 = vsub.f32 0.0, %v72
    %v74 = vmul.f32 %v73, 1.442695
    %v75 = vpow.pop %v74
    %v76 = vadd.f32 %v75, 1.0
    %v77 = vlog2.pop %v76
    %v78 = vmul.f32 %v77, 0.6931472
    %v79 = vadd.f32 %v70, %v78
    %vm80 = vcmp.eq.s32.totalorder %v59, 1
    %v81 = vsel %vm80, %v58, %v57
    %v82 = vsub.f32 %v79, %v81
    %v83 = vsel %vm69, %v82, 0.0
    %v84 = vcvt.s32.f32 %v59
    %v85 = vsel %vm69, %v84, 0.0
    %v86 = vld [vmem:[#allocation2] sm:$0x1]
    %87 = vadd.xlane.f32.xlu0 %v83
    %v88 = vpop.xlane.xlu0 %87
    %v89 = vrot.slane %v88, 4
    %v90 = vadd.f32 %v88, %v89
    %v91 = vrot.slane %v90, 2
    %v92 = vadd.f32 %v90, %v91
    %v93 = vrot.slane %v92, 1
    %v94 = vadd.f32 %v92, %v93
    %v95 = vadd.f32 %v86, %v94
    %vm96 = vcmask 0
    %97 = vst.msk [vmem:[#allocation2] sm:$0x1] %vm96, %v95
    %v98 = vld [vmem:[#allocation3] sm:$0x1]
    %99 = vadd.xlane.f32.xlu0 %v85
    %v100 = vpop.xlane.xlu0 %99
    %v101 = vrot.slane %v100, 4
    %v102 = vadd.f32 %v100, %v101
    %v103 = vrot.slane %v102, 2
    %v104 = vadd.f32 %v102, %v103
    %v105 = vrot.slane %v104, 1
    %v106 = vadd.f32 %v104, %v105
    %v107 = vadd.f32 %v98, %v106
    %108 = vst.msk [vmem:[#allocation3] sm:$0x1] %vm96, %v107
    // Predicated region
    $region30: #{tpu_custom_call.1} parent=1 // pred_check
      %p109 = pneg %p50
    $region31: #{tpu_custom_call.1} parent=1 // pred_check_branch
      %111 = sbr.rel (%p109) target = $region33
    $region32: #{tpu_custom_call.1} parent=1 // pred_region
      %v112 = vld [vmem:[#allocation2] sm:$0x1]
      %v113 = vmul.f32 %v112, 0.125
      %v114 = vld [vmem:[#allocation3] sm:$0x1]
      %v115 = vmul.f32 %v114, 0.125
      %v116 = vsub.f32 0.0, %v113
      %v117 = vmul.f32 %v116, 1.442695
      %v118 = vpow.pop %v117
      %v119 = vsub.f32 1.0, %v118
      %v120 = vmul.f32 %v119, %v119
      %v121 = vmul.f32 %v120, 0.25
      %v122 = vmul.f32 %v121, %v113
      %v123 = vmul.f32 %v122, %v115
      %v124 = vmul.f32 %v118, %v118
      %v125 = vmul.f32 %v124, 0.75
      %v126 = vmul.f32 %v125, %v113
      %v127 = vsub.f32 1.0, %v115
      %v128 = vmul.f32 %v126, %v127
      %v129 = vadd.f32 %v123, %v128
      %130 = vst.msk [vmem:[#allocation10] sm:$0x1] %vm96, %v129
    $region33: #{tpu_custom_call.1} parent=1 // pred_fallthru
      _
    // Predicated region
    $region34: #{tpu_custom_call.1} parent=1 // pred_check
      _
    $region35: #{tpu_custom_call.1} parent=1 // pred_check_branch
      %132 = sbr.rel (0) target = $region37
    $region36: #{tpu_custom_call.1} parent=1 // pred_region
      %s134 = ssub.s32 16, 16
      %135 = vsyncadd [#allocation6], %s134
      %s137 = sshll.u32 [#allocation10], 4
      %s138 = int_to_ptr.vmem [resolvable:$true] %s137
      %140 = dma.vmem_to_hbm [thread:$0]  %s138, 16, %s3, [#allocation6]
    $region37: #{tpu_custom_call.1} parent=1 // pred_fallthru
      _
    // Predicated region
    $region38: #{tpu_custom_call.1} parent=1 // pred_check
      _
    $region39: #{tpu_custom_call.1} parent=1 // pred_check_branch
      %142 = sbr.rel (0) target = $region41
    $region40: #{tpu_custom_call.1} parent=1 // pred_region
      %143 = dma.done [#allocation6], 16
    $region41: #{tpu_custom_call.1} parent=1 // pred_fallthru
      _
    %144 = vsyncpa [#allocation5], 1
    %145 = vsyncpa [#allocation8], 1
    %146 = vsyncpa [#allocation6], 1

</llo_original>
